<compile_context>
chip_gen: v7x
topology: tpu7x:2x2x1
jax: 0.10.0
libtpu: 0.0.40
codegen_flags: <defaults>
</compile_context>

<pallas_src>
from functools import partial

import jax
import jax.numpy as jnp
from jax.experimental import pallas as pl
from jax.experimental.pallas import tpu as pltpu


def _rmsnorm_kernel(x_ref, g_ref, o_ref, *, scale, eps):
    # x_ref: (H_blk, S_blk, D) slab for one batch element; g_ref: (H_blk, 1, D).
    x = x_ref[...].astype(jnp.float32)
    sumsq = jnp.sum(x * x, axis=-1, keepdims=True)              # (H_blk, S_blk, 1)
    # max(||x||, eps) == sqrt(max(sumsq, eps^2)) since sumsq >= 0; rsqrt -> EUP,
    # and folding `scale` here avoids an extra full-tile VPU multiply.
    inv = scale * jax.lax.rsqrt(jnp.maximum(sumsq, eps * eps))  # (H_blk, S_blk, 1)
    g = g_ref[...].astype(jnp.float32)                          # (H_blk, 1, D), bcast over S
    o_ref[...] = (x * inv * g).astype(o_ref.dtype)


def _choose_blocks(H, S, D, itemsize, target_bytes=2 << 20):
    """Pick (H_blk, S_blk) so one (H_blk, S_blk, D) tile is ~2 MiB and the
    second-to-last block dim stays aligned to the dtype's native sublane tile."""
    sub = 8 * max(1, 4 // itemsize)          # f32: 8, bf16: 16, int8/fp8: 32
    row_bytes = H * D * itemsize             # one seq row across all heads
    if row_bytes * min(S, sub) <= target_bytes:
        h_blk = H
        rows = target_bytes // row_bytes
        if rows >= S:
            s_blk = S                        # full extent -> always legal
        else:
            s_blk = max(sub, (rows // sub) * sub)
    else:
        # Very large H*D: also block over heads (first dim of the block is not
        # layout-constrained, so any h_blk is legal).
        s_blk = S if S <= sub else sub
        h_blk = max(1, min(H, target_bytes // (D * itemsize * s_blk)))
    return h_blk, s_blk


def rmsnorm(x, gamma, *, eps=1e-12):
    """x: (B, H, S, D), gamma: (H, 1, D). Returns (B, H, S, D)."""
    B, H, S, D = x.shape
    assert gamma.shape == (H, 1, D)
    scale = float(D) ** 0.5

    itemsize = jnp.dtype(x.dtype).itemsize
    h_blk, s_blk = _choose_blocks(H, S, D, itemsize)
    num_h = pl.cdiv(H, h_blk)
    num_s = pl.cdiv(S, s_blk)

    kernel = partial(_rmsnorm_kernel, scale=scale, eps=eps)

    # Purely HBM-bandwidth bound: read + write x, plus gamma (roughly) once.
    cost = pl.CostEstimate(
        flops=3 * B * H * S * D,
        transcendentals=B * H * S,
        bytes_accessed=2 * B * H * S * D * itemsize
        + H * D * jnp.dtype(gamma.dtype).itemsize,
    )

    return pl.pallas_call(
        kernel,
        out_shape=jax.ShapeDtypeStruct((B, H, S, D), x.dtype),
        grid_spec=pltpu.PrefetchScalarGridSpec(
            num_scalar_prefetch=0,
            grid=(B, num_h, num_s),
            in_specs=[
                # x tile: a head chunk, an S chunk, full D; batch dim squeezed.
                pl.BlockSpec((None, h_blk, s_blk, D), lambda b, h, s: (b, h, s, 0)),
                # gamma: index only depends on the head block -> stays resident
                # across the whole (b, s) sweep.
                pl.BlockSpec((h_blk, 1, D), lambda b, h, s: (h, 0, 0)),
            ],
            out_specs=pl.BlockSpec((None, h_blk, s_blk, D), lambda b, h, s: (b, h, s, 0)),
        ),
        compiler_params=pltpu.CompilerParams(
            dimension_semantics=("parallel", "parallel", "parallel")
        ),
        cost_estimate=cost,
    )(x, gamma)


def rmsnorm_ref(x, gamma, *, eps=1e-12):
    x32 = x.astype(jnp.float32)
    l2 = jnp.maximum(jnp.sqrt(jnp.sum(x32 * x32, axis=-1, keepdims=True)), eps)
    scale = float(x.shape[-1]) ** 0.5
    return ((x32 / l2) * scale * gamma.astype(jnp.float32)).astype(x.dtype)


if __name__ == "__main__":
    key = jax.random.PRNGKey(0)
    B, H, S, D = 2, 4, 8, 32

    x = jax.random.normal(key, (B, H, S, D), dtype=jnp.float32)
    # Deterministic parameter init: nn.Parameter(torch.ones(heads, 1, dim)).
    gamma = jnp.ones((H, 1, D), dtype=jnp.float32)

    out = rmsnorm(x, gamma)
    out = jax.block_until_ready(out)

    ref = rmsnorm_ref(x, gamma)
    assert out.shape == (B, H, S, D)
    assert jnp.allclose(out, ref, atol=1e-5, rtol=1e-5)

    print("KERNEL_OK")
</pallas_src>

<mosaic_0001>
module attributes {stable_mosaic.version = 11 : i64} {
  func.func @_rmsnorm_kernel(%arg0: i32, %arg1: i32, %arg2: i32, %arg3: memref<1x4x8x32xf32, #tpu.memory_space<vmem>>, %arg4: memref<4x1x32xf32, #tpu.memory_space<vmem>>, %arg5: memref<1x4x8x32xf32, #tpu.memory_space<vmem>>) attributes {dimension_semantics = [#tpu.dimension_semantics<parallel>, #tpu.dimension_semantics<parallel>, #tpu.dimension_semantics<parallel>], iteration_bounds = array<i64: 2, 1, 1>, scalar_prefetch = 0 : i64, scratch_operands = 0 : i64, tpu.core_type = #tpu.core_type<tc>, window_params = [{transform_indices = @transform_0, window_bounds = array<i64: 1, 4, 8, 32>}, {transform_indices = @transform_1, window_bounds = array<i64: 4, 1, 32>}, {transform_indices = @transform_2, window_bounds = array<i64: 1, 4, 8, 32>}]} {
    %c0 = arith.constant 0 : index
    %c0_0 = arith.constant 0 : index
    %c0_1 = arith.constant 0 : index
    %c0_2 = arith.constant 0 : index
    %0 = vector.load %arg3[%c0, %c0_0, %c0_1, %c0_2] : memref<1x4x8x32xf32, #tpu.memory_space<vmem>>, vector<1x4x8x32xf32>
    %1 = vector.shape_cast %0 : vector<1x4x8x32xf32> to vector<4x8x32xf32>
    %2 = arith.mulf %1, %1 : vector<4x8x32xf32>
    %cst = arith.constant dense<0.000000e+00> : vector<4x8xf32>
    %3 = vector.multi_reduction <add>, %2, %cst [2] : vector<4x8x32xf32> to vector<4x8xf32>
    %4 = vector.shape_cast %3 : vector<4x8xf32> to vector<4x8x1xf32>
    %cst_3 = arith.constant 1.000000e-24 : f32
    %5 = vector.broadcast %cst_3 : f32 to vector<4x8x1xf32>
    %6 = arith.maximumf %4, %5 : vector<4x8x1xf32>
    %7 = math.rsqrt %6 : vector<4x8x1xf32>
    %cst_4 = arith.constant 5.65685415 : f32
    %8 = vector.broadcast %cst_4 : f32 to vector<4x8x1xf32>
    %9 = arith.mulf %8, %7 : vector<4x8x1xf32>
    %c0_5 = arith.constant 0 : index
    %c0_6 = arith.constant 0 : index
    %c0_7 = arith.constant 0 : index
    %10 = vector.load %arg4[%c0_5, %c0_6, %c0_7] : memref<4x1x32xf32, #tpu.memory_space<vmem>>, vector<4x1x32xf32>
    %11 = vector.broadcast %9 : vector<4x8x1xf32> to vector<4x8x32xf32>
    %12 = arith.mulf %1, %11 : vector<4x8x32xf32>
    %13 = vector.broadcast %10 : vector<4x1x32xf32> to vector<4x8x32xf32>
    %14 = arith.mulf %12, %13 : vector<4x8x32xf32>
    %c0_8 = arith.constant 0 : index
    %c0_9 = arith.constant 0 : index
    %c0_10 = arith.constant 0 : index
    %c0_11 = arith.constant 0 : index
    %15 = vector.load %arg5[%c0_8, %c0_9, %c0_10, %c0_11] : memref<1x4x8x32xf32, #tpu.memory_space<vmem>>, vector<1x4x8x32xf32>
    %16 = vector.shape_cast %15 : vector<1x4x8x32xf32> to vector<4x8x32xf32>
    %17 = vector.shape_cast %14 : vector<4x8x32xf32> to vector<1x4x8x32xf32>
    tpu.vector_store %arg5[%c0_8, %c0_9, %c0_10, %c0_11], %17 {strides = array<i32>} : memref<1x4x8x32xf32, #tpu.memory_space<vmem>>, vector<1x4x8x32xf32>,
    return
  }
  func.func @transform_0(%arg0: i32, %arg1: i32, %arg2: i32) -> (i32, i32, i32, i32) {
    %c0_i32 = arith.constant 0 : i32
    %c0_i32_0 = arith.constant 0 : i32
    return %arg0, %arg1, %arg2, %c0_i32 : i32, i32, i32, i32
  }
  func.func @transform_1(%arg0: i32, %arg1: i32, %arg2: i32) -> (i32, i32, i32) {
    %c0_i32 = arith.constant 0 : i32
    %c0_i32_0 = arith.constant 0 : i32
    %c0_i32_1 = arith.constant 0 : i32
    return %arg1, %c0_i32, %c0_i32_0 : i32, i32, i32
  }
  func.func @transform_2(%arg0: i32, %arg1: i32, %arg2: i32) -> (i32, i32, i32, i32) {
    %c0_i32 = arith.constant 0 : i32
    %c0_i32_0 = arith.constant 0 : i32
    return %arg0, %arg1, %arg2, %c0_i32 : i32, i32, i32, i32
  }
}

</mosaic_0001>

<llo_original>
// kernel: tpu_custom_call.1
$region0: #{tpu_custom_call.1}
  #allocation0 [shape = 'u32[]', space=smem, size = 0x4, offset = 0x4, fixed_abs, tag = 'smem constant byte address 0x4 - core index']
  #allocation1 [shape = 'u32[144,128]{1,0:T(1,128)}', space=vmem, size = 0x12000, scoped, tag = 'internal scratch']
  %s0 = inlined_call_operand.hbm [shape: f32[2,4,8,32], index: 0, kind: input, shape index: {}]
  %s1 = inlined_call_operand.hbm [shape: f32[4,1,32], index: 1, kind: input, shape index: {}]
  %s2 = inlined_call_operand.hbm [shape: f32[2,4,8,32], index: 2, kind: output, shape index: {}]
  %s3 = sld [smem:[#allocation0]]
  $region49: #{tpu_custom_call.1} parent=0
    _
  %s5 = ssub.s32 1, %s3
  %s6 = scalar_select 0, %s5, %s3
  $region1: #{tpu_custom_call.1} parent=0
    #allocation2 [shape = 'u8[32768]{0}', space=vmem, size = 0x8000, scoped, tag = 'input window, operand 0']
    #allocation3 [shape = 's32[2]{0}', space=sflag, size = 0x8, scoped, tag = 'scoped memory for tpu_custom_call.1']
    #allocation4 [shape = 's32[2]{0}', space=sflag, size = 0x8, scoped, tag = 'scoped memory for tpu_custom_call.1']
    #allocation5 [shape = 'u8[2048]{0}', space=vmem, size = 0x800, scoped, tag = 'input window, operand 1, single buffered']
    #allocation6 [shape = 's32[1]{0}', space=sflag, size = 0x4, scoped, tag = 'scoped memory for tpu_custom_call.1']
    #allocation7 [shape = 'u8[32768]{0}', space=vmem, size = 0x8000, scoped, tag = 'output window, operand 0']
    %7 = vsyncpa [#allocation3], 0
    %s8 = scalar_lea.sflag [#allocation3], 1
    %9 = vsyncpa %s8, 0
    %10 = vsyncpa [#allocation6], 0
    %11 = vsyncpa [#allocation4], 0
    %s12 = scalar_lea.sflag [#allocation4], 1
    %13 = vsyncpa %s12, 0
    loop: start=0, step=1, limit=4
    $region2: #{tpu_custom_call.1} parent=1 // loop_pre_header
      _
    $region3: #{tpu_custom_call.1} parent=1 // loop_header
      %s15 = sphi 0, %s19
      %p16 = scmp.ge.s32.totalorder %s15, 4
      %s22 = sphi 0, %s41
      %s23 = sphi 0, %s37
      %s24 = sphi 0, %s33
      %s25 = sphi 0, %s22
      %s26 = sphi 0, %s23
      %s27 = sphi 0, %s24
      %s28 = sphi 0, %s25
      %s29 = sphi 0, %s26
      %s30 = sphi 0, %s27
      %s48 = sphi 0, %s50
      %s51 = sphi 0, %s48
      %s52 = sphi 0, %s51
      %s68 = sphi 0, %s52
      %s74 = sphi 0, %s76
      %s77 = sphi 0, %s74
      %s78 = sphi 0, %s77
      %s94 = sphi 0, %s78
      %s104 = sphi 0, %s106
      %s107 = sphi 0, %s104
      %s108 = sphi 0, %s107
      %s124 = sphi 0, %s108
    $region4: #{tpu_custom_call.1} parent=1 // loop_header_branch
      %18 = sbr.rel (%p16) target = $region8
    $region5: #{tpu_custom_call.1} parent=1 // loop_body
      %s20 = ssub.s32 %s15, 1
      %s21 = ssub.s32 %s15, 2
      %s31 = sadd.s32 1, %s24
      %p32 = scmp.ge.s32.totalorder %s31, 1
      %s33 = scalar_select %p32, 0, %s31
      %s34 = sadd.s32 1, %s23
      %s35 = scalar_select %p32, %s34, %s23
      %p36 = scmp.ge.s32.totalorder %s35, 1
      %s37 = scalar_select %p36, 0, %s35
      %s38 = sadd.s32 1, %s22
      %s39 = scalar_select %p36, %s38, %s22
      %p40 = scmp.ge.s32.totalorder %s39, 2
      %s41 = scalar_select %p40, 0, %s39
      %s42 = ssub.s32 %s22, %s41
      %s43 = ssub.s32 %s23, %s37
      %s44 = sor.u32 %s42, %s43
      %s45 = ssub.s32 %s24, %s33
      %s46 = sor.u32 %s44, %s45
      %p47 = scmp.eq.s32.totalorder %s46, 0
      %s49 = sadd.s32 %s48, 1
      %s50 = scalar_select %p47, %s48, %s49
      %p53 = pneg %p47
      %p54 = scmp.eq.s32.totalorder %s15, 1
      %p55 = por %p53, %p54
      %p56 = scmp.ne.s32.totalorder %s48, %s51
      %p57 = scmp.eq.s32.totalorder %s15, 0
      %p58 = por %p56, %p57
      %p59 = scmp.ne.s32.totalorder %s48, %s51
      %p60 = scmp.eq.s32.totalorder %s20, 1
      %p61 = por %p59, %p60
      %p62 = scmp.ne.s32.totalorder %s51, %s52
      %p63 = scmp.eq.s32.totalorder %s20, 0
      %p64 = por %p62, %p63
      %p65 = scmp.ne.s32.totalorder %s51, %s52
      %p66 = scmp.eq.s32.totalorder %s21, 1
      %p67 = por %p65, %p66
      %p69 = scmp.ne.s32.totalorder %s52, %s68
      %p70 = scmp.eq.s32.totalorder %s21, 0
      %p71 = por %p69, %p70
      %s72 = ssub.s32 %s23, %s37
      %p73 = scmp.eq.s32.totalorder %s72, 0
      %s75 = sadd.s32 %s74, 1
      %s76 = scalar_select %p73, %s74, %s75
      %p79 = pneg %p73
      %p80 = scmp.eq.s32.totalorder %s15, 1
      %p81 = por %p79, %p80
      %p82 = scmp.ne.s32.totalorder %s74, %s77
      %p83 = scmp.eq.s32.totalorder %s15, 0
      %p84 = por %p82, %p83
      %p85 = scmp.ne.s32.totalorder %s74, %s77
      %p86 = scmp.eq.s32.totalorder %s20, 1
      %p87 = por %p85, %p86
      %p88 = scmp.ne.s32.totalorder %s77, %s78
      %p89 = scmp.eq.s32.totalorder %s20, 0
      %p90 = por %p88, %p89
      %p91 = scmp.ne.s32.totalorder %s77, %s78
      %p92 = scmp.eq.s32.totalorder %s21, 1
      %p93 = por %p91, %p92
      %p95 = scmp.ne.s32.totalorder %s78, %s94
      %p96 = scmp.eq.s32.totalorder %s21, 0
      %p97 = por %p95, %p96
      %s98 = ssub.s32 %s22, %s41
      %s99 = ssub.s32 %s23, %s37
      %s100 = sor.u32 %s98, %s99
      %s101 = ssub.s32 %s24, %s33
      %s102 = sor.u32 %s100, %s101
      %p103 = scmp.eq.s32.totalorder %s102, 0
      %s105 = sadd.s32 %s104, 1
      %s106 = scalar_select %p103, %s104, %s105
      %p109 = pneg %p103
      %p110 = scmp.eq.s32.totalorder %s15, 1
      %p111 = por %p109, %p110
      %p112 = scmp.ne.s32.totalorder %s104, %s107
      %p113 = scmp.eq.s32.totalorder %s15, 0
      %p114 = por %p112, %p113
      %p115 = scmp.ne.s32.totalorder %s104, %s107
      %p116 = scmp.eq.s32.totalorder %s20, 1
      %p117 = por %p115, %p116
      %p118 = scmp.ne.s32.totalorder %s107, %s108
      %p119 = scmp.eq.s32.totalorder %s20, 0
      %p120 = por %p118, %p119
      %p121 = scmp.ne.s32.totalorder %s107, %s108
      %p122 = scmp.eq.s32.totalorder %s21, 1
      %p123 = por %p121, %p122
      %p125 = scmp.ne.s32.totalorder %s108, %s124
      %p126 = scmp.eq.s32.totalorder %s21, 0
      %p127 = por %p125, %p126
      %p128 = scmp.le.s32.totalorder 1, %s15
      %p129 = scmp.lt.s32.totalorder %s15, 3
      %p130 = pnand %p128, %p129
      %p131 = pneg %p130
      // Predicated region
      $region9: #{tpu_custom_call.1} parent=5 // pred_check
        _
      $region10: #{tpu_custom_call.1} parent=5 // pred_check_branch
        %133 = sbr.rel (%p130) target = $region12
      $region11: #{tpu_custom_call.1} parent=5 // pred_region
        %s134 = ssub.s32 %s15, 1
        // Predicated region
        $region13: #{tpu_custom_call.1} parent=11 // pred_check
          %p135 = pneg %p90
        $region14: #{tpu_custom_call.1} parent=11 // pred_check_branch
          %137 = sbr.rel (%p135) target = $region16
        $region15: #{tpu_custom_call.1} parent=11 // pred_region
          %s138 = smul.u32 4, %s26
          %s140 = ssub.s32 64, 64
          %141 = vsyncadd [#allocation6], %s140
          %s142 = smul.addr %s138, 16
          %s143 = scalar_lea.hbm %s1, %s142
          %s144 = sshll.u32 [#allocation5], 4
          %s145 = int_to_ptr.vmem [resolvable:$true] %s144
          %150 = dma.hbm_to_vmem [thread:$0]  %s143, 64, %s145, [#allocation6], 16, 16, 1
        $region16: #{tpu_custom_call.1} parent=11 // pred_fallthru
          _
      $region12: #{tpu_custom_call.1} parent=5 // pred_fallthru
        _
      %p151 = scmp.lt.s32.totalorder %s15, 2
      // Predicated region
      $region17: #{tpu_custom_call.1} parent=5 // pred_check
        %p152 = pneg %p151
      $region18: #{tpu_custom_call.1} parent=5 // pred_check_branch
        %154 = sbr.rel (%p152) target = $region20
      $region19: #{tpu_custom_call.1} parent=5 // pred_region
        // Predicated region
        $region21: #{tpu_custom_call.1} parent=19 // pred_check
          %p155 = pneg %p58
        $region22: #{tpu_custom_call.1} parent=19 // pred_check_branch
          %157 = sbr.rel (%p155) target = $region24
        $region23: #{tpu_custom_call.1} parent=19 // pred_region
          %s158 = sand.u32 %s48, 1
          %s159 = scalar_lea.sflag [#allocation3], %s158
          %s160 = sand.u32 %s48, 1
          %s161 = smul.addr %s160, 32
          %s162 = scalar_lea.vmem [#allocation2], %s161
          %s163 = smul.u32 4, %s23
          %s165 = ssub.s32 512, 512
          %166 = vsyncadd %s159, %s165
          %s167 = sadd.s32 %s24, %s163
          %s168 = smul.addr %s22, 4
          %s169 = sadd.s32 %s167, %s168
          %s170 = smul.addr %s169, 128
          %s171 = scalar_lea.hbm %s0, %s170
          %s172 = sshll.u32 %s162, 4
          %s173 = int_to_ptr.vmem [resolvable:$true] %s172
          %178 = dma.hbm_to_vmem [thread:$0]  %s171, 512, %s173, %s159, 128, 128, 8
        $region24: #{tpu_custom_call.1} parent=19 // pred_fallthru
          _
      $region20: #{tpu_custom_call.1} parent=5 // pred_fallthru
        _
      %p179 = scmp.le.s32.totalorder 1, %s15
      %p180 = scmp.lt.s32.totalorder %s15, 3
      %p181 = pnand %p179, %p180
      %p182 = pneg %p181
      // Predicated region
      $region25: #{tpu_custom_call.1} parent=5 // pred_check
        _
      $region26: #{tpu_custom_call.1} parent=5 // pred_check_branch
        %184 = sbr.rel (%p181) target = $region28
      $region27: #{tpu_custom_call.1} parent=5 // pred_region
        %s185 = ssub.s32 %s15, 1
        %s186 = sand.u32 %s51, 1
        %s187 = scalar_lea.sflag [#allocation3], %s186
        %s188 = sand.u32 %s51, 1
        %s189 = smul.addr %s188, 32
        %s190 = scalar_lea.vmem [#allocation2], %s189
        // Predicated region
        $region29: #{tpu_custom_call.1} parent=27 // pred_check
          %p191 = pneg %p64
        $region30: #{tpu_custom_call.1} parent=27 // pred_check_branch
          %193 = sbr.rel (%p191) target = $region32
        $region31: #{tpu_custom_call.1} parent=27 // pred_region
          %194 = dma.done %s187, 512
        $region32: #{tpu_custom_call.1} parent=27 // pred_fallthru
          _
        // Predicated region
        $region33: #{tpu_custom_call.1} parent=27 // pred_check
          %p195 = pneg %p90
        $region34: #{tpu_custom_call.1} parent=27 // pred_check_branch
          %197 = sbr.rel (%p195) target = $region36
        $region35: #{tpu_custom_call.1} parent=27 // pred_region
          %198 = dma.done [#allocation6], 64
        $region36: #{tpu_custom_call.1} parent=27 // pred_fallthru
          _
        %s199 = sand.u32 %s51, 1
        %s200 = scalar_lea.sflag [#allocation3], %s199
        %s201 = sand.u32 %s51, 1
        %s202 = smul.addr %s201, 32
        %s203 = scalar_lea.vmem [#allocation2], %s202
        %p204 = pneg %p64
        %p205 = pneg %p61
        %p206 = pneg %p90
        %p207 = pneg %p87
        %p208 = pneg %p120
        %p209 = pneg %p117
        %s210 = sand.u32 %s107, 1
        %s211 = scalar_lea.sflag [#allocation4], %s210
        %s212 = sand.u32 %s107, 1
        %s213 = smul.addr %s212, 32
        %s214 = scalar_lea.vmem [#allocation7], %s213
        %s215 = smul.u32 4, %s26
        %s216 = smul.u32 4, %s26
        %s217 = smul.u32 4, %s26
        %v218 = vld [vmem:[%s190] sm:$0xff]
        %v219 = vld [vmem:[%s190 + $0x8] sm:$0xff]
        %v220 = vld [vmem:[%s190 + $0x10] sm:$0xff]
        %v221 = vld [vmem:[%s190 + $0x18] sm:$0xff]
        %v222 = vmul.f32 %v218, %v218
        %v223 = vmul.f32 %v219, %v219
        %v224 = vmul.f32 %v220, %v220
        %v225 = vmul.f32 %v221, %v221
        %vm226 = vcmask 261120
        %v227 = vsel %vm226, %v222, 0.0
        %228 = vadd.xlane.f32.xlu0 %v227
        %v229 = vpop.xlane.xlu0 %228
        %v230 = vsel %vm226, %v223, 0.0
        %231 = vadd.xlane.f32.xlu0 %v230
        %v232 = vpop.xlane.xlu0 %231
        %v233 = vsel %vm226, %v224, 0.0
        %234 = vadd.xlane.f32.xlu0 %v233
        %v235 = vpop.xlane.xlu0 %234
        %v236 = vsel %vm226, %v225, 0.0
        %237 = vadd.xlane.f32.xlu0 %v236
        %v238 = vpop.xlane.xlu0 %237
        %v239 = vmax.f32 %v229, 1e-24
        %v240 = vmax.f32 %v232, 1e-24
        %v241 = vmax.f32 %v235, 1e-24
        %v242 = vmax.f32 %v238, 1e-24
        %v243 = vrsqrt.pop %v239
        %v244 = vrsqrt.pop %v240
        %v245 = vrsqrt.pop %v241
        %v246 = vrsqrt.pop %v242
        %v247 = vmul.f32 %v243, 5.656854
        %v248 = vmul.f32 %v244, 5.656854
        %v249 = vmul.f32 %v245, 5.656854
        %v250 = vmul.f32 %v246, 5.656854
        %v251 = vld [vmem:[#allocation5] sm:$0x1]
        %v252 = vld [vmem:[#allocation5 + $0x1] sm:$0x1]
        %v253 = vld [vmem:[#allocation5 + $0x2] sm:$0x1]
        %v254 = vld [vmem:[#allocation5 + $0x3] sm:$0x1]
        %v255 = vmul.f32 %v218, %v247
        %v256 = vmul.f32 %v219, %v248
        %v257 = vmul.f32 %v220, %v249
        %v258 = vmul.f32 %v221, %v250
        %v263 = vlaneseq
        %v264 = vshrl.u32 %v263, 7
        %v265 = vsub.s32 0, %v264
        %v266 = vrot.slane %v251, %v265
        %v267 = vlaneseq
        %v268 = vshrl.u32 %v267, 7
        %v269 = vsub.s32 0, %v268
        %v270 = vrot.slane %v252, %v269
        %v271 = vlaneseq
        %v272 = vshrl.u32 %v271, 7
        %v273 = vsub.s32 0, %v272
        %v274 = vrot.slane %v253, %v273
        %v275 = vlaneseq
        %v276 = vshrl.u32 %v275, 7
        %v277 = vsub.s32 0, %v276
        %v278 = vrot.slane %v254, %v277
        %v283 = vmul.f32 %v255, %v266
        %v284 = vmul.f32 %v256, %v270
        %v285 = vmul.f32 %v257, %v274
        %v286 = vmul.f32 %v258, %v278
        %287 = vst.msk [vmem:[%s214] sm:$0xff] %vm226, %v283
        %288 = vst.msk [vmem:[%s214 + $0x8] sm:$0xff] %vm226, %v284
        %289 = vst.msk [vmem:[%s214 + $0x10] sm:$0xff] %vm226, %v285
        %290 = vst.msk [vmem:[%s214 + $0x18] sm:$0xff] %vm226, %v286
        %s291 = sand.u32 %s107, 1
        %s292 = scalar_lea.sflag [#allocation4], %s291
        %s293 = sand.u32 %s107, 1
        %s294 = smul.addr %s293, 32
        %s295 = scalar_lea.vmem [#allocation7], %s294
        // Predicated region
        $region37: #{tpu_custom_call.1} parent=27 // pred_check
          %p296 = pneg %p117
        $region38: #{tpu_custom_call.1} parent=27 // pred_check_branch
          %298 = sbr.rel (%p296) target = $region40
        $region39: #{tpu_custom_call.1} parent=27 // pred_region
          %s299 = smul.u32 4, %s26
          %s301 = ssub.s32 512, 512
          %302 = vsyncadd %s292, %s301
          %s303 = sadd.s32 %s27, %s299
          %s304 = smul.addr %s25, 4
          %s305 = sadd.s32 %s303, %s304
          %s306 = smul.addr %s305, 128
          %s307 = scalar_lea.hbm %s2, %s306
          %s308 = sshll.u32 %s295, 4
          %s309 = int_to_ptr.vmem [resolvable:$true] %s308
          %314 = dma.vmem_to_hbm [thread:$0]  %s309, 512, %s307, %s292, 128, 128, 8
        $region40: #{tpu_custom_call.1} parent=27 // pred_fallthru
          _
      $region28: #{tpu_custom_call.1} parent=5 // pred_fallthru
        _
      %p315 = scmp.le.s32.totalorder 2, %s15
      // Predicated region
      $region41: #{tpu_custom_call.1} parent=5 // pred_check
        %p316 = pneg %p315
      $region42: #{tpu_custom_call.1} parent=5 // pred_check_branch
        %318 = sbr.rel (%p316) target = $region44
      $region43: #{tpu_custom_call.1} parent=5 // pred_region
        %s319 = ssub.s32 %s15, 2
        // Predicated region
        $region45: #{tpu_custom_call.1} parent=43 // pred_check
          %p320 = pneg %p123
        $region46: #{tpu_custom_call.1} parent=43 // pred_check_branch
          %322 = sbr.rel (%p320) target = $region48
        $region47: #{tpu_custom_call.1} parent=43 // pred_region
          %s323 = sand.u32 %s108, 1
          %s324 = scalar_lea.sflag [#allocation4], %s323
          %s325 = sand.u32 %s108, 1
          %s326 = smul.addr %s325, 32
          %s327 = scalar_lea.vmem [#allocation7], %s326
          %328 = dma.done %s324, 512
        $region48: #{tpu_custom_call.1} parent=43 // pred_fallthru
          _
      $region44: #{tpu_custom_call.1} parent=5 // pred_fallthru
        _
    $region6: #{tpu_custom_call.1} parent=1 // loop_footer
      %s19 = sadd.s32 1, %s15
    $region7: #{tpu_custom_call.1} parent=1 // loop_footer_branch
      %14 = sbr.rel target = $region3
    $region8: #{tpu_custom_call.1} parent=1 // loop_exit
      _
    %329 = vsyncpa [#allocation3], 1
    %s330 = scalar_lea.sflag [#allocation3], 1
    %331 = vsyncpa %s330, 1
    %332 = vsyncpa [#allocation6], 1
    %333 = vsyncpa [#allocation4], 1
    %s334 = scalar_lea.sflag [#allocation4], 1
    %335 = vsyncpa %s334, 1

</llo_original>
